<compile_context>
chip_gen: v6e
topology: v6e:2x2x1
jax: 0.10.0
libtpu: 0.0.40
codegen_flags: <defaults>
</compile_context>

<pallas_src>
import functools

import jax
import jax.numpy as jnp
import numpy as np
from jax.experimental import pallas as pl
from jax.experimental.pallas import tpu as pltpu


def _attn_kernel(seq_ref, u_ref, mask_ref, out_ref):
    # seq_ref : (TB, L, D)   sequence embeddings (f32 or bf16)
    # u_ref   : (TB, 1, D)   precomputed u = target @ W^T (f32 or bf16)
    # mask_ref: (TB, L)      f32 mask
    # out_ref : (TB, L)      f32 softmax scores
    seq = seq_ref[...].astype(jnp.float32)            # (TB, L, D)
    u = u_ref[...].astype(jnp.float32)                # (TB, 1, D)
    m = mask_ref[...]                                 # (TB, L)

    # Bilinear score: VPU multiply + lane (D) reduce. No transpose, no M=1 matmul.
    scores = jnp.sum(seq * u, axis=-1)                # (TB, L) f32

    # Mask-multiply then additive -1e9 on masked positions (PyTorch order).
    scores = scores * m + (-1e9) * (1.0 - m)

    # Numerically stable softmax along L, all in f32.
    mx = jnp.max(scores, axis=-1, keepdims=True)
    e = jnp.exp(scores - mx)
    s = jnp.sum(e, axis=-1, keepdims=True)
    # NOTE: exact divide kept instead of pl.reciprocal(approx=True): the kernel is
    # HBM-bound on the seq stream, the tiny (TB,1) divide is off the critical slot,
    # and the approx EUP reciprocal would cost f32 output accuracy for no wall win.
    out_ref[...] = (e / s).astype(out_ref.dtype)


def _pick_batch_tile(B, L, D, tile_bytes=2 * 1024 * 1024):
    """Choose TB so the (TB, L, D) f32-equivalent seq tile is ~tile_bytes.

    Double-buffered this stays comfortably inside the scoped-VMEM default on
    v5e (16 MiB), v6e (32 MiB) and v7x (32 MiB of 64 MiB physical).
    """
    per_row = L * D * 4  # budget at f32-equivalent (kernel upcasts for the math)
    tb = max(1, tile_bytes // per_row)
    tb = min(tb, B)
    if tb < B:
        # Blocks smaller than the full batch: keep the sublane dim of the 2-D
        # mask/out blocks a multiple of 8 (vreg sublane count).
        tb = max(8, (tb // 8) * 8)
    return tb


@functools.partial(jax.jit, static_argnames=("compute_dtype", "batch_tile"))
def attention_layer_bilinear(sequence_emb, w_kernel, target_emb, mask,
                             *, compute_dtype=None, batch_tile=None):
    """DIEN AttentionLayer (bilinear_attention, use_attention_softmax=True).

    sequence_emb: (B, L, D) f32, w_kernel: (D, D) f32,
    target_emb: (B, D) f32, mask: (B, L) -> (B, L) f32 softmax scores.
    """
    B, L, D = sequence_emb.shape

    # Hoisted: one batched (B,D)x(D,D) matmul in XLA (full MXU), f32-accurate.
    # u[b, d] = sum_e W[d, e] * t[b, e]  ==  (t @ W^T)[b, d]
    u = jnp.dot(target_emb.astype(jnp.float32),
                jnp.transpose(w_kernel).astype(jnp.float32),
                precision=jax.lax.Precision.HIGHEST,
                preferred_element_type=jnp.float32)            # (B, D)

    seq = sequence_emb
    m = mask.astype(jnp.float32)
    if compute_dtype is not None:
        # Optional: halve HBM bytes of the dominant streams; softmax stays f32.
        seq = seq.astype(compute_dtype)
        u = u.astype(compute_dtype)

    tb = batch_tile if batch_tile is not None else _pick_batch_tile(B, L, D)

    # Pad batch up to a multiple of TB. Padded rows have mask == 0 -> uniform
    # softmax rows that are sliced off at the end (no NaNs, no effect on output).
    b_pad = ((B + tb - 1) // tb) * tb
    if b_pad != B:
        pad = b_pad - B
        seq = jnp.pad(seq, ((0, pad), (0, 0), (0, 0)))
        u = jnp.pad(u, ((0, pad), (0, 0)))
        m = jnp.pad(m, ((0, pad), (0, 0)))
    u3 = u.reshape(b_pad, 1, D)

    grid = (b_pad // tb,)
    out = pl.pallas_call(
        _attn_kernel,
        out_shape=jax.ShapeDtypeStruct((b_pad, L), jnp.float32),
        grid_spec=pltpu.PrefetchScalarGridSpec(
            num_scalar_prefetch=0,
            grid=grid,
            in_specs=[
                pl.BlockSpec((tb, L, D), lambda i: (i, 0, 0)),   # seq tile
                pl.BlockSpec((tb, 1, D), lambda i: (i, 0, 0)),   # u = t @ W^T
                pl.BlockSpec((tb, L), lambda i: (i, 0)),          # mask
            ],
            out_specs=pl.BlockSpec((tb, L), lambda i: (i, 0)),    # lane-dense (TB, L)
        ),
        compiler_params=pltpu.CompilerParams(
            # Batch tiles are independent -> megacore / v7x dual-TC sharding.
            dimension_semantics=("parallel",)),
    )(seq, u3, m)
    return out[:B]


def _reference(sequence_emb, w_kernel, target_emb, mask):
    # Pure-JAX reference mirroring the PyTorch forward (f32-accurate contraction).
    score = jnp.einsum("bld,de,be->bl", sequence_emb, w_kernel, target_emb,
                       precision=jax.lax.Precision.HIGHEST)
    score = score * mask
    score = score + (-1e9) * (1.0 - mask)
    return jax.nn.softmax(score, axis=-1)


if __name__ == "__main__":
    # TODO(synk): 'dot_attention' / 'din_attention' branches and attention_dropout
    # are not implemented (module defaults: bilinear_attention, dropout=0.0).
    B, L, D = 2, 8, 32  # batch, seq_len, model_dim

    key = jax.random.PRNGKey(0)
    k_seq, k_tgt = jax.random.split(key, 2)

    sequence_emb = jax.random.normal(k_seq, (B, L, D), dtype=jnp.float32)
    target_emb = jax.random.normal(k_tgt, (B, D), dtype=jnp.float32)
    # deterministic mask: first rows valid, tail masked out
    lens = jnp.array([L, L // 2], dtype=jnp.int32)
    mask = (jnp.arange(L)[None, :] < lens[:, None]).astype(jnp.float32)

    # parameter init exactly as in the module's __init__: W_kernel = eye(model_dim)
    w_kernel = jnp.eye(D, dtype=jnp.float32)

    # 1) f32 path, strict check against the reference.
    out = attention_layer_bilinear(sequence_emb, w_kernel, target_emb, mask)
    out = jax.block_until_ready(out)
    ref = _reference(sequence_emb, w_kernel, target_emb, mask)
    np.testing.assert_allclose(np.asarray(out), np.asarray(ref), rtol=1e-4, atol=1e-5)

    # 2) bf16-fed variant (halves the HBM bytes of the seq stream); softmax stays f32.
    out_bf16 = attention_layer_bilinear(sequence_emb, w_kernel, target_emb, mask,
                                        compute_dtype=jnp.bfloat16)
    out_bf16 = jax.block_until_ready(out_bf16)
    assert out_bf16.shape == (B, L)
    assert bool(jnp.all(jnp.isfinite(out_bf16)))

    # 3) Multi-step grid + batch padding path: B=10 padded to 16, two TB=8 tiles,
    #    non-identity W to exercise the hoisted target@W^T matmul.
    B2 = 10
    k2s, k2t, k2m, k2w = jax.random.split(jax.random.PRNGKey(1), 4)
    seq2 = jax.random.normal(k2s, (B2, L, D), dtype=jnp.float32)
    tgt2 = jax.random.normal(k2t, (B2, D), dtype=jnp.float32)
    mask2 = (jax.random.uniform(k2m, (B2, L)) > 0.3).astype(jnp.float32)
    w2 = 0.1 * jax.random.normal(k2w, (D, D), dtype=jnp.float32)
    out2 = attention_layer_bilinear(seq2, w2, tgt2, mask2, batch_tile=8)
    out2 = jax.block_until_ready(out2)
    ref2 = _reference(seq2, w2, tgt2, mask2)
    np.testing.assert_allclose(np.asarray(out2), np.asarray(ref2), rtol=1e-4, atol=1e-5)

    print("KERNEL_OK")
</pallas_src>

<mosaic_0001>
module attributes {stable_mosaic.version = 11 : i64} {
  func.func @_attn_kernel(%arg0: i32, %arg1: memref<2x8x32xf32, #tpu.memory_space<vmem>>, %arg2: memref<2x1x32xf32, #tpu.memory_space<vmem>>, %arg3: memref<2x8xf32, #tpu.memory_space<vmem>>, %arg4: memref<2x8xf32, #tpu.memory_space<vmem>>) attributes {dimension_semantics = [#tpu.dimension_semantics<parallel>], iteration_bounds = array<i64: 1>, scalar_prefetch = 0 : i64, scratch_operands = 0 : i64, tpu.core_type = #tpu.core_type<tc>, window_params = [{transform_indices = @transform_0, window_bounds = array<i64: 2, 8, 32>}, {transform_indices = @transform_1, window_bounds = array<i64: 2, 1, 32>}, {transform_indices = @transform_2, window_bounds = array<i64: 2, 8>}, {transform_indices = @transform_3, window_bounds = array<i64: 2, 8>}]} {
    %c0 = arith.constant 0 : index
    %c0_0 = arith.constant 0 : index
    %c0_1 = arith.constant 0 : index
    %0 = vector.load %arg1[%c0, %c0_0, %c0_1] : memref<2x8x32xf32, #tpu.memory_space<vmem>>, vector<2x8x32xf32>
    %c0_2 = arith.constant 0 : index
    %c0_3 = arith.constant 0 : index
    %c0_4 = arith.constant 0 : index
    %1 = vector.load %arg2[%c0_2, %c0_3, %c0_4] : memref<2x1x32xf32, #tpu.memory_space<vmem>>, vector<2x1x32xf32>
    %c0_5 = arith.constant 0 : index
    %c0_6 = arith.constant 0 : index
    %2 = vector.load %arg3[%c0_5, %c0_6] : memref<2x8xf32, #tpu.memory_space<vmem>>, vector<2x8xf32>
    %3 = vector.broadcast %1 : vector<2x1x32xf32> to vector<2x8x32xf32>
    %4 = arith.mulf %0, %3 : vector<2x8x32xf32>
    %cst = arith.constant dense<0.000000e+00> : vector<2x8xf32>
    %5 = vector.multi_reduction <add>, %4, %cst [2] : vector<2x8x32xf32> to vector<2x8xf32>
    %6 = arith.mulf %5, %2 : vector<2x8xf32>
    %cst_7 = arith.constant 1.000000e+00 : f32
    %7 = vector.broadcast %cst_7 : f32 to vector<2x8xf32>
    %8 = arith.subf %7, %2 : vector<2x8xf32>
    %cst_8 = arith.constant -1.000000e+09 : f32
    %9 = vector.broadcast %cst_8 : f32 to vector<2x8xf32>
    %10 = arith.mulf %9, %8 : vector<2x8xf32>
    %11 = arith.addf %6, %10 : vector<2x8xf32>
    %cst_9 = arith.constant dense<0xFF800000> : vector<2xf32>
    %12 = vector.multi_reduction <maximumf>, %11, %cst_9 [1] : vector<2x8xf32> to vector<2xf32>
    %13 = vector.shape_cast %12 : vector<2xf32> to vector<2x1xf32>
    %14 = vector.broadcast %13 : vector<2x1xf32> to vector<2x8xf32>
    %15 = arith.subf %11, %14 : vector<2x8xf32>
    %16 = math.exp %15 : vector<2x8xf32>
    %cst_10 = arith.constant dense<0.000000e+00> : vector<2xf32>
    %17 = vector.multi_reduction <add>, %16, %cst_10 [1] : vector<2x8xf32> to vector<2xf32>
    %18 = vector.shape_cast %17 : vector<2xf32> to vector<2x1xf32>
    %19 = vector.broadcast %18 : vector<2x1xf32> to vector<2x8xf32>
    %20 = arith.divf %16, %19 : vector<2x8xf32>
    %c0_11 = arith.constant 0 : index
    %c0_12 = arith.constant 0 : index
    %21 = vector.load %arg4[%c0_11, %c0_12] : memref<2x8xf32, #tpu.memory_space<vmem>>, vector<2x8xf32>
    tpu.vector_store %arg4[%c0_11, %c0_12], %20 {strides = array<i32>} : memref<2x8xf32, #tpu.memory_space<vmem>>, vector<2x8xf32>,
    return
  }
  func.func @transform_0(%arg0: i32) -> (i32, i32, i32) {
    %c0_i32 = arith.constant 0 : i32
    %c0_i32_0 = arith.constant 0 : i32
    %c0_i32_1 = arith.constant 0 : i32
    return %arg0, %c0_i32, %c0_i32_0 : i32, i32, i32
  }
  func.func @transform_1(%arg0: i32) -> (i32, i32, i32) {
    %c0_i32 = arith.constant 0 : i32
    %c0_i32_0 = arith.constant 0 : i32
    %c0_i32_1 = arith.constant 0 : i32
    return %arg0, %c0_i32, %c0_i32_0 : i32, i32, i32
  }
  func.func @transform_2(%arg0: i32) -> (i32, i32) {
    %c0_i32 = arith.constant 0 : i32
    %c0_i32_0 = arith.constant 0 : i32
    return %arg0, %c0_i32 : i32, i32
  }
  func.func @transform_3(%arg0: i32) -> (i32, i32) {
    %c0_i32 = arith.constant 0 : i32
    %c0_i32_0 = arith.constant 0 : i32
    return %arg0, %c0_i32 : i32, i32
  }
}

</mosaic_0001>

<llo_original>
// kernel: attention_layer_bilinear.1
$region0: #{attention_layer_bilinear.1}
  #allocation0 [shape = 'u32[]', space=smem, size = 0x4, offset = 0x4, fixed_abs, tag = 'smem constant byte address 0x4 - core index']
  #allocation1 [shape = 'u32[144,128]{1,0:T(1,128)}', space=vmem, size = 0x12000, scoped, tag = 'internal scratch']
  %s0 = inlined_call_operand.vmem [shape: f32[2,8,32], index: 0, kind: input, shape index: {}]
  %s1 = inlined_call_operand.vmem [shape: f32[2,1,32], index: 1, kind: input, shape index: {}]
  %s2 = inlined_call_operand.vmem [shape: f32[2,8], index: 2, kind: input, shape index: {}]
  %s3 = inlined_call_operand.hbm [shape: f32[2,8], index: 3, kind: output, shape index: {}]
  %s4 = sld [smem:[#allocation0]]
  $region22: #{attention_layer_bilinear.1} parent=0
    _
  %s6 = ssub.s32 1, %s4
  %s7 = scalar_select 0, %s6, %s4
  $region1: #{attention_layer_bilinear.1} parent=0
    #allocation2 [shape = 'u8[1024]{0}', space=vmem, size = 0x400, scoped, tag = 'output window, operand 0, single buffered']
    #allocation3 [shape = 's32[1]{0}', space=sflag, size = 0x4, scoped, tag = 'scoped memory for attention_layer_bilinear.1']
    %8 = vsyncpa [#allocation3], 0
    // Predicated region
    $region2: #{attention_layer_bilinear.1} parent=1 // pred_check
      _
    $region3: #{attention_layer_bilinear.1} parent=1 // pred_check_branch
      %10 = sbr.rel (0) target = $region5
    $region4: #{attention_layer_bilinear.1} parent=1 // pred_region
      _
    $region5: #{attention_layer_bilinear.1} parent=1 // pred_fallthru
      _
    // Predicated region
    $region6: #{attention_layer_bilinear.1} parent=1 // pred_check
      _
    $region7: #{attention_layer_bilinear.1} parent=1 // pred_check_branch
      %12 = sbr.rel (0) target = $region9
    $region8: #{attention_layer_bilinear.1} parent=1 // pred_region
      _
    $region9: #{attention_layer_bilinear.1} parent=1 // pred_fallthru
      _
    // Predicated region
    $region10: #{attention_layer_bilinear.1} parent=1 // pred_check
      _
    $region11: #{attention_layer_bilinear.1} parent=1 // pred_check_branch
      %14 = sbr.rel (0) target = $region13
    $region12: #{attention_layer_bilinear.1} parent=1 // pred_region
      _
    $region13: #{attention_layer_bilinear.1} parent=1 // pred_fallthru
      _
    %v15 = vld [vmem:[%s0] sm:$0xff]
    %v16 = vld [vmem:[%s0 + $0x8] sm:$0xff]
    %v17 = vld [vmem:[%s1] sm:$0x1]
    %v18 = vld [vmem:[%s1 + $0x1] sm:$0x1]
    %v19 = vld [vmem:[%s2] sm:$0x3]
    %v22 = vlaneseq
    %v23 = vshrl.u32 %v22, 7
    %v24 = vsub.s32 0, %v23
    %v25 = vrot.slane %v17, %v24
    %v26 = vlaneseq
    %v27 = vshrl.u32 %v26, 7
    %v28 = vsub.s32 0, %v27
    %v29 = vrot.slane %v18, %v28
    %v32 = vmul.f32 %v15, %v25
    %v33 = vmul.f32 %v16, %v29
    %vm34 = vcmask 261120
    %v35 = vsel %vm34, %v32, 0.0
    %36 = vadd.xlane.f32.xlu0 %v35
    %v37 = vpop.xlane.xlu0 %36
    %v38 = vsel %vm34, %v33, 0.0
    %39 = vadd.xlane.f32.xlu0 %v38
    %v40 = vpop.xlane.xlu0 %39
    %v42 = vlaneseq
    %v43 = vshrl.u32 %v42, 7
    %v44 = vsub.s32 0, %v43
    %v45 = vrot.slane %v19, %v44
    %47 = vbcast.lane.b32.xlu0 %v45, 256
    %v48 = vpop.permute.xlu0 %47
    %v49 = vlaneseq
    %v50 = vshrl.u32 %v49, 7
    %v51 = vsub.s32 1, %v50
    %v52 = vrot.slane %v19, %v51
    %54 = vbcast.lane.b32.xlu0 %v52, 256
    %v55 = vpop.permute.xlu0 %54
    %v58 = vmul.f32 %v37, %v48
    %v59 = vmul.f32 %v40, %v55
    %v60 = vsub.f32 1.0, %v19
    %v61 = vmul.f32 %v60, -1e+09
    %v63 = vlaneseq
    %v64 = vshrl.u32 %v63, 7
    %v65 = vsub.s32 0, %v64
    %v66 = vrot.slane %v61, %v65
    %68 = vbcast.lane.b32.xlu0 %v66, 256
    %v69 = vpop.permute.xlu0 %68
    %v70 = vlaneseq
    %v71 = vshrl.u32 %v70, 7
    %v72 = vsub.s32 1, %v71
    %v73 = vrot.slane %v61, %v72
    %75 = vbcast.lane.b32.xlu0 %v73, 256
    %v76 = vpop.permute.xlu0 %75
    %v79 = vadd.f32 %v58, %v69
    %v80 = vadd.f32 %v59, %v76
    %83 = vset.pattern.permute.xlu0 0
    %84 = vperm.xlu0 %83, %v79
    %v85 = vpop.permute.xlu0 %84
    %86 = vset.pattern.permute.xlu0 0
    %87 = vperm.xlu0 %86, %v80
    %v88 = vpop.permute.xlu0 %87
    %v89 = vlaneseq
    %v90 = vand.u32 %v89, 127
    %v91 = vlaneseq
    %v92 = vshrl.u32 %v91, 7
    %v93 = vsub.s32 %v90, %v92
    %v94 = vrot.slane %v85, %v93
    %v95 = vlaneseq
    %v96 = vshrl.u32 %v95, 7
    %v97 = vsub.s32 %v90, %v96
    %v98 = vrot.slane %v88, %v97
    %vm99 = vcmask 1041409
    %v100 = vsel %vm99, %v98, %v94
    %vm102 = vcmask 58368
    %v103 = vsel %vm102, %v100, -inf
    %104 = vmax.xlane.f32.xlu0 %v103
    %v105 = vpop.xlane.xlu0 %104
    %v107 = vlaneseq
    %v108 = vshrl.u32 %v107, 7
    %v109 = vsub.s32 0, %v108
    %v110 = vrot.slane %v105, %v109
    %v111 = vlaneseq
    %v112 = vshrl.u32 %v111, 7
    %v113 = vsub.s32 1, %v112
    %v114 = vrot.slane %v105, %v113
    %v117 = vsub.f32 %v79, %v110
    %v118 = vsub.f32 %v80, %v114
    %v119 = vmul.f32 %v117, 1.442695
    %v120 = vpow.pop %v119
    %v121 = vmul.f32 %v118, 1.442695
    %v122 = vpow.pop %v121
    %125 = vset.pattern.permute.xlu0 0
    %126 = vperm.xlu0 %125, %v120
    %v127 = vpop.permute.xlu0 %126
    %128 = vset.pattern.permute.xlu0 0
    %129 = vperm.xlu0 %128, %v122
    %v130 = vpop.permute.xlu0 %129
    %v131 = vlaneseq
    %v132 = vshrl.u32 %v131, 7
    %v133 = vsub.s32 %v90, %v132
    %v134 = vrot.slane %v127, %v133
    %v135 = vlaneseq
    %v136 = vshrl.u32 %v135, 7
    %v137 = vsub.s32 %v90, %v136
    %v138 = vrot.slane %v130, %v137
    %v139 = vsel %vm99, %v138, %v134
    %v141 = vsel %vm102, %v139, 0.0
    %142 = vadd.xlane.f32.xlu0 %v141
    %v143 = vpop.xlane.xlu0 %142
    %v145 = vlaneseq
    %v146 = vshrl.u32 %v145, 7
    %v147 = vsub.s32 0, %v146
    %v148 = vrot.slane %v143, %v147
    %v149 = vlaneseq
    %v150 = vshrl.u32 %v149, 7
    %v151 = vsub.s32 1, %v150
    %v152 = vrot.slane %v143, %v151
    %v155 = vrcp.pop %v148
    %v156 = vmul.f32 %v120, %v155
    %v157 = vrcp.pop %v152
    %v158 = vmul.f32 %v122, %v157
    %161 = vset.pattern.permute.xlu0 0
    %162 = vperm.xlu0 %161, %v156
    %v163 = vpop.permute.xlu0 %162
    %164 = vset.pattern.permute.xlu0 0
    %165 = vperm.xlu0 %164, %v158
    %v166 = vpop.permute.xlu0 %165
    %v167 = vlaneseq
    %v168 = vshrl.u32 %v167, 7
    %v169 = vsub.s32 %v90, %v168
    %v170 = vrot.slane %v163, %v169
    %v171 = vlaneseq
    %v172 = vshrl.u32 %v171, 7
    %v173 = vsub.s32 %v90, %v172
    %v174 = vrot.slane %v166, %v173
    %v175 = vsel %vm99, %v174, %v170
    %177 = vst.msk [vmem:[#allocation2] sm:$0x3] %vm102, %v175
    // Predicated region
    $region14: #{attention_layer_bilinear.1} parent=1 // pred_check
      _
    $region15: #{attention_layer_bilinear.1} parent=1 // pred_check_branch
      %179 = sbr.rel (0) target = $region17
    $region16: #{attention_layer_bilinear.1} parent=1 // pred_region
      %s181 = ssub.s32 32, 32
      %182 = vsyncadd [#allocation3], %s181
      %s184 = sshll.u32 [#allocation2], 4
      %s185 = int_to_ptr.vmem [resolvable:$true] %s184
      %187 = dma.vmem_to_hbm [thread:$0]  %s185, 32, %s3, [#allocation3]
    $region17: #{attention_layer_bilinear.1} parent=1 // pred_fallthru
      _
    // Predicated region
    $region18: #{attention_layer_bilinear.1} parent=1 // pred_check
      _
    $region19: #{attention_layer_bilinear.1} parent=1 // pred_check_branch
      %189 = sbr.rel (0) target = $region21
    $region20: #{attention_layer_bilinear.1} parent=1 // pred_region
      %190 = dma.done [#allocation3], 32
    $region21: #{attention_layer_bilinear.1} parent=1 // pred_fallthru
      _
    %191 = vsyncpa [#allocation3], 1

</llo_original>
